<compile_context>
chip_gen: v6e
topology: v6e:2x2x1
jax: 0.10.0
libtpu: 0.0.40
codegen_flags: <defaults>
</compile_context>

<pallas_src>
import functools
import math

import jax
import jax.numpy as jnp
import numpy as np
from jax.experimental import pallas as pl
from jax.experimental.pallas import tpu as pltpu

_LANES = 128
_SUBLANES = 16  # bf16 sublane packing


def _round_up(x, m):
    return ((x + m - 1) // m) * m


# --------------------------------------------------------------------------------------
# Kernel
# --------------------------------------------------------------------------------------
def cnn_classifier_kernel(win_ref, bm_ref, wc_ref, wh_ref, bh_ref,
                          wf_ref, bf_ref, wo_ref, bo_ref, out_ref, *, l_pad):
    """One batch block: fused conv matmul + masked global max-pool + highway + MLP head."""
    Bb, _, k_pad = win_ref.shape

    # ---- conv: one fused MXU matmul for all filter sizes / channels --------------------
    win2 = win_ref[...].reshape(Bb * l_pad, k_pad)          # tile-aligned merge (l_pad % 16 == 0)
    conv = jnp.dot(win2, wc_ref[...], preferred_element_type=jnp.float32)   # [Bb*l_pad, N_pad] f32
    conv = conv.reshape(Bb, l_pad, -1)

    # bias + additive validity mask (invalid (row, channel) -> -1e30) + ReLU, then global
    # max-pool over time.  Post-ReLU values are >= 0, so masked / padded rows (== 0) never
    # win the max -- exactly matching the per-filter output lengths of the PyTorch convs.
    conv = jnp.maximum(conv + bm_ref[...], 0.0)             # [Bb, l_pad, N_pad]
    pred = jnp.max(conv, axis=1)                            # [Bb, N_pad]

    # ---- highway ------------------------------------------------------------------------
    h = jnp.dot(pred.astype(jnp.bfloat16), wh_ref[...],
                preferred_element_type=jnp.float32) + bh_ref[...]
    sig = jax.nn.sigmoid(h)
    pred = sig * jnp.maximum(h, 0.0) + (1.0 - sig) * pred

    # ---- feature2out -> out2logits (dropout is identity at inference) --------------------
    x = jnp.dot(pred.astype(jnp.bfloat16), wf_ref[...],
                preferred_element_type=jnp.float32) + bf_ref[...]
    logits = jnp.dot(x.astype(jnp.bfloat16), wo_ref[...],
                     preferred_element_type=jnp.float32) + bo_ref[...]
    out_ref[...] = logits                                   # [Bb, KL_pad] lane-dense store


# --------------------------------------------------------------------------------------
# Params (mirror the PyTorch 'normal' init, std = 1/sqrt(dim0))
# --------------------------------------------------------------------------------------
def init_params(key, *, vocab_size, embed_dim, filter_sizes, num_filters,
                padding_idx, k_label):
    feature_dim = sum(num_filters)
    keys = jax.random.split(key, 7 + 2 * len(filter_sizes))
    ki = iter(keys)

    def normal(k, shape, std):
        return (std * jax.random.normal(k, shape)).astype(jnp.float32)

    emb_table = normal(next(ki), (vocab_size, embed_dim), 1.0 / math.sqrt(vocab_size))
    emb_table = emb_table.at[padding_idx].set(0.0)          # nn.Embedding padding_idx

    conv = []
    for f, n in zip(filter_sizes, num_filters):
        # PyTorch Conv2d weight is [n, 1, f, E]; stored here as [f, E, n].
        w = normal(next(ki), (f, embed_dim, n), 1.0 / math.sqrt(n))
        b = normal(next(ki), (1, n), 1.0 / math.sqrt(n))
        conv.append((w, b))

    # Linear layers pre-transposed to [in, out].
    wh = normal(next(ki), (feature_dim, feature_dim), 1.0 / math.sqrt(feature_dim))
    bh = normal(next(ki), (1, feature_dim), 1.0 / math.sqrt(feature_dim))
    wf = normal(next(ki), (feature_dim, 100), 1.0 / math.sqrt(100))
    bf = normal(next(ki), (1, 100), 1.0 / math.sqrt(100))
    wo = normal(next(ki), (100, k_label), 1.0 / math.sqrt(k_label))
    bo = normal(next(ki), (1, k_label), 1.0 / math.sqrt(k_label))

    return {"emb_table": emb_table, "conv": conv, "wh": wh, "bh": bh,
            "wf": wf, "bf": bf, "wo": wo, "bo": bo}


# --------------------------------------------------------------------------------------
# Block-size selection (VMEM-budget aware; keeps >= 2 grid steps for v7x's 2 TensorCores)
# --------------------------------------------------------------------------------------
def _pick_batch_block(B, batch_block, l_pad, k_pad, n_pad, h_pad, kl_pad, budget_bytes):
    # resident (grid-constant) operands: bf16 weights + f32 bias/mask, double-buffered
    weights = 2 * 2 * (k_pad * n_pad + n_pad * n_pad + n_pad * h_pad + h_pad * kl_pad)
    weights += 2 * 4 * (l_pad * n_pad + n_pad + h_pad + kl_pad)
    # per-sample footprint: window block (bf16, dbl-buffered) + f32 conv intermediate + out
    per_sample = 2 * l_pad * k_pad * 2 + l_pad * n_pad * 4 + 2 * kl_pad * 4 + 64
    avail = max(budget_bytes - weights, per_sample * 8)
    fit = max(8, (avail // per_sample) // 8 * 8)
    blk = min(batch_block, max(8, _round_up(pl.cdiv(B, 2), 8)), fit)
    return max(8, blk)


# --------------------------------------------------------------------------------------
# Wrapper
# --------------------------------------------------------------------------------------
def cnn_classifier_forward(inp, params, *, filter_sizes, num_filters, k_label,
                           batch_block=256, vmem_budget_bytes=40 * 1024 * 1024):
    """inp: [B, T] int32 token ids -> logits [B, k_label] ([B] if k_label == 1)."""
    B, T = inp.shape
    emb_table = params["emb_table"]
    E = emb_table.shape[1]
    f_min, f_max = min(filter_sizes), max(filter_sizes)
    feature_dim = sum(num_filters)

    # Padded static dims.
    L = T - f_min + 1                                 # number of im2col windows (largest branch)
    L_pad = _round_up(L, _SUBLANES)                   # sublane aligned (bf16: 16)
    K = f_max * E                                     # fused contraction dim
    K_pad = _round_up(K, _LANES)                      # lane-dense window width
    N_pad = _round_up(feature_dim, _LANES)            # conv channels / feature_dim
    H_pad = _round_up(100, _LANES)                    # feature2out width
    KL_pad = _round_up(k_label, _LANES)               # logits width (lane-dense store)

    # Batch tiling: VMEM-budget capped block, always >= 2 grid steps (v7x has 2 TCs).
    B_blk = _pick_batch_block(B, batch_block, L_pad, K_pad, N_pad, H_pad, KL_pad,
                              vmem_budget_bytes)
    n_blocks = max(2, pl.cdiv(B, B_blk))
    B_pad = n_blocks * B_blk

    # --- lane-dense im2col window slab, built fused with the embedding gather -----------
    # windows[b, t] = concat(emb[b, t], ..., emb[b, t + f_max - 1]); taps past T-1 are
    # clamped -- they only feed (time, channel) slots whose weights are zero or whose
    # rows are masked out, so the clamp is exact.
    emb_bf = emb_table.astype(jnp.bfloat16)
    t_idx = jnp.minimum(jnp.arange(L_pad)[:, None] + jnp.arange(f_max)[None, :], T - 1)
    win_ids = inp[:, t_idx]                                           # [B, L_pad, f_max]
    windows = emb_bf[win_ids].reshape(B, L_pad, K)                    # [B, L_pad, K] bf16
    windows = jnp.pad(windows, ((0, B_pad - B), (0, 0), (0, K_pad - K)))

    # --- pack weights: one stacked conv weight + fused bias/validity mask ---------------
    wc = jnp.zeros((K_pad, N_pad), jnp.float32)       # unused taps / channels stay 0
    bm_np = np.full((L_pad, N_pad), -1e30, np.float32)  # additive mask: bias where valid
    off = 0
    for f, n, (w, b) in zip(filter_sizes, num_filters, params["conv"]):
        wc = wc.at[:f * E, off:off + n].set(w.reshape(f * E, n))
        bm_np[:T - f + 1, off:off + n] = np.asarray(b[0])
        off += n
    wc = wc.astype(jnp.bfloat16)
    bm = jnp.asarray(bm_np)

    def pad2(x, r, c):
        return jnp.pad(x, ((0, r - x.shape[0]), (0, c - x.shape[1])))

    wh = pad2(params["wh"], N_pad, N_pad).astype(jnp.bfloat16)
    bh = pad2(params["bh"], 1, N_pad)
    wf = pad2(params["wf"], N_pad, H_pad).astype(jnp.bfloat16)
    bf = pad2(params["bf"], 1, H_pad)
    wo = pad2(params["wo"], H_pad, KL_pad).astype(jnp.bfloat16)
    bo = pad2(params["bo"], 1, KL_pad)

    # --- pallas_call with batch grid ------------------------------------------------------
    def _const_spec(arr):
        return pl.BlockSpec(arr.shape, lambda i, _nd=arr.ndim: (0,) * _nd)

    operands = (windows, bm, wc, wh, bh, wf, bf, wo, bo)
    in_specs = [pl.BlockSpec((B_blk, L_pad, K_pad), lambda i: (i, 0, 0))] + \
               [_const_spec(a) for a in operands[1:]]
    out_spec = pl.BlockSpec((B_blk, KL_pad), lambda i: (i, 0))

    kernel = functools.partial(cnn_classifier_kernel, l_pad=L_pad)
    logits_pad = pl.pallas_call(
        kernel,
        out_shape=jax.ShapeDtypeStruct((B_pad, KL_pad), jnp.float32),
        grid=(B_pad // B_blk,),
        in_specs=in_specs,
        out_specs=out_spec,
        compiler_params=pltpu.CompilerParams(
            dimension_semantics=("parallel",),
            vmem_limit_bytes=64 * 1024 * 1024,
        ),
    )(*operands)

    logits = logits_pad[:B, :k_label]
    if k_label == 1:                                   # PyTorch .squeeze(1)
        logits = logits[:, 0]
    return logits


# --------------------------------------------------------------------------------------
# Pure-JAX f32 reference (bf16 matmuls in the kernel deviate slightly -> loose tolerance)
# --------------------------------------------------------------------------------------
def reference_forward(inp, params, *, filter_sizes):
    emb = params["emb_table"][inp]                    # [B, T, E] f32
    B, T, E = emb.shape
    pools = []
    for f, (w, b) in zip(filter_sizes, params["conv"]):
        L = T - f + 1
        acc = jnp.zeros((B, L, w.shape[-1]), jnp.float32)
        for j in range(f):
            acc = acc + jnp.einsum("ble,en->bln", emb[:, j:j + L, :], w[j])
        acc = jnp.maximum(acc + b[0], 0.0)
        pools.append(jnp.max(acc, axis=1))
    pred = jnp.concatenate(pools, axis=1)
    h = pred @ params["wh"] + params["bh"]
    sig = jax.nn.sigmoid(h)
    pred = sig * jnp.maximum(h, 0.0) + (1.0 - sig) * pred
    pred = pred @ params["wf"] + params["bf"]
    return pred @ params["wo"] + params["bo"]


# --------------------------------------------------------------------------------------
if __name__ == "__main__":
    B, T = 2, 16
    embed_dim = 32
    vocab_size = 20
    filter_sizes = [2, 3, 4]
    num_filters = [8, 8, 16]          # feature_dim = 32
    padding_idx = 0
    k_label = 2
    # num_rep / emb_dim_single are unused in forward().

    key = jax.random.PRNGKey(0)
    pkey, ikey = jax.random.split(key)
    params = init_params(pkey, vocab_size=vocab_size, embed_dim=embed_dim,
                         filter_sizes=filter_sizes, num_filters=num_filters,
                         padding_idx=padding_idx, k_label=k_label)

    inp = jax.random.randint(ikey, (B, T), 0, vocab_size, dtype=jnp.int32)

    logits = cnn_classifier_forward(inp, params, filter_sizes=filter_sizes,
                                    num_filters=num_filters, k_label=k_label)
    jax.block_until_ready(logits)
    assert logits.shape == (B, k_label) and logits.dtype == jnp.float32

    ref = reference_forward(inp, params, filter_sizes=filter_sizes)
    np.testing.assert_allclose(np.asarray(logits), np.asarray(ref), rtol=0.1, atol=0.1)
    print("KERNEL_OK")
</pallas_src>

<mosaic_0001>
module attributes {stable_mosaic.version = 11 : i64} {
  func.func @cnn_classifier_kernel(%arg0: i32, %arg1: memref<8x16x128xbf16, #tpu.memory_space<vmem>>, %arg2: memref<16x128xf32, #tpu.memory_space<vmem>>, %arg3: memref<128x128xbf16, #tpu.memory_space<vmem>>, %arg4: memref<128x128xbf16, #tpu.memory_space<vmem>>, %arg5: memref<1x128xf32, #tpu.memory_space<vmem>>, %arg6: memref<128x128xbf16, #tpu.memory_space<vmem>>, %arg7: memref<1x128xf32, #tpu.memory_space<vmem>>, %arg8: memref<128x128xbf16, #tpu.memory_space<vmem>>, %arg9: memref<1x128xf32, #tpu.memory_space<vmem>>, %arg10: memref<8x128xf32, #tpu.memory_space<vmem>>) attributes {dimension_semantics = [#tpu.dimension_semantics<parallel>], iteration_bounds = array<i64: 2>, scalar_prefetch = 0 : i64, scratch_operands = 0 : i64, tpu.core_type = #tpu.core_type<tc>, window_params = [{transform_indices = @transform_0, window_bounds = array<i64: 8, 16, 128>}, {pipeline_mode = #tpu.pipeline_mode<synchronous>, transform_indices = @transform_1, window_bounds = array<i64: 16, 128>}, {pipeline_mode = #tpu.pipeline_mode<synchronous>, transform_indices = @transform_2, window_bounds = array<i64: 128, 128>}, {pipeline_mode = #tpu.pipeline_mode<synchronous>, transform_indices = @transform_3, window_bounds = array<i64: 128, 128>}, {pipeline_mode = #tpu.pipeline_mode<synchronous>, transform_indices = @transform_4, window_bounds = array<i64: 1, 128>}, {pipeline_mode = #tpu.pipeline_mode<synchronous>, transform_indices = @transform_5, window_bounds = array<i64: 128, 128>}, {pipeline_mode = #tpu.pipeline_mode<synchronous>, transform_indices = @transform_6, window_bounds = array<i64: 1, 128>}, {pipeline_mode = #tpu.pipeline_mode<synchronous>, transform_indices = @transform_7, window_bounds = array<i64: 128, 128>}, {pipeline_mode = #tpu.pipeline_mode<synchronous>, transform_indices = @transform_8, window_bounds = array<i64: 1, 128>}, {transform_indices = @transform_9, window_bounds = array<i64: 8, 128>}]} {
    %c0 = arith.constant 0 : index
    %c0_0 = arith.constant 0 : index
    %c0_1 = arith.constant 0 : index
    %0 = vector.load %arg1[%c0, %c0_0, %c0_1] : memref<8x16x128xbf16, #tpu.memory_space<vmem>>, vector<8x16x128xbf16>
    %1 = vector.shape_cast %0 : vector<8x16x128xbf16> to vector<128x128xbf16>
    %c0_2 = arith.constant 0 : index
    %c0_3 = arith.constant 0 : index
    %2 = vector.load %arg3[%c0_2, %c0_3] : memref<128x128xbf16, #tpu.memory_space<vmem>>, vector<128x128xbf16>
    %cst = arith.constant dense<0.000000e+00> : vector<128x128xf32>
    %3 = tpu.matmul %1, %2, %cst {dimension_numbers = #tpu.dot_dimension_numbers<[1], [0], [0], [1], [0, 0, 1, 1], [], []>} : vector<128x128xbf16>, vector<128x128xbf16>, vector<128x128xf32> -> vector<128x128xf32>
    %4 = vector.shape_cast %3 : vector<128x128xf32> to vector<8x16x128xf32>
    %c0_4 = arith.constant 0 : index
    %c0_5 = arith.constant 0 : index
    %5 = vector.load %arg2[%c0_4, %c0_5] : memref<16x128xf32, #tpu.memory_space<vmem>>, vector<16x128xf32>
    %6 = vector.shape_cast %5 : vector<16x128xf32> to vector<1x16x128xf32>
    %7 = vector.broadcast %6 : vector<1x16x128xf32> to vector<8x16x128xf32>
    %8 = arith.addf %4, %7 : vector<8x16x128xf32>
    %cst_6 = arith.constant 0.000000e+00 : f32
    %9 = vector.broadcast %cst_6 : f32 to vector<8x16x128xf32>
    %10 = arith.maximumf %8, %9 : vector<8x16x128xf32>
    %cst_7 = arith.constant dense<0xFF800000> : vector<8x128xf32>
    %11 = vector.multi_reduction <maximumf>, %10, %cst_7 [1] : vector<8x16x128xf32> to vector<8x128xf32>
    %12 = arith.truncf %11 : vector<8x128xf32> to vector<8x128xbf16>
    %c0_8 = arith.constant 0 : index
    %c0_9 = arith.constant 0 : index
    %13 = vector.load %arg4[%c0_8, %c0_9] : memref<128x128xbf16, #tpu.memory_space<vmem>>, vector<128x128xbf16>
    %cst_10 = arith.constant dense<0.000000e+00> : vector<8x128xf32>
    %14 = tpu.matmul %12, %13, %cst_10 {dimension_numbers = #tpu.dot_dimension_numbers<[1], [0], [0], [1], [0, 0, 1, 1], [], []>} : vector<8x128xbf16>, vector<128x128xbf16>, vector<8x128xf32> -> vector<8x128xf32>
    %c0_11 = arith.constant 0 : index
    %c0_12 = arith.constant 0 : index
    %15 = vector.load %arg5[%c0_11, %c0_12] : memref<1x128xf32, #tpu.memory_space<vmem>>, vector<1x128xf32>
    %16 = vector.broadcast %15 : vector<1x128xf32> to vector<8x128xf32>
    %17 = arith.addf %14, %16 : vector<8x128xf32>
    %18 = arith.negf %17 : vector<8x128xf32>
    %19 = math.exp %18 : vector<8x128xf32>
    %cst_13 = arith.constant 1.000000e+00 : f32
    %20 = vector.broadcast %cst_13 : f32 to vector<8x128xf32>
    %21 = arith.addf %20, %19 : vector<8x128xf32>
    %22 = arith.divf %20, %21 : vector<8x128xf32>
    %cst_14 = arith.constant 0.000000e+00 : f32
    %23 = vector.broadcast %cst_14 : f32 to vector<8x128xf32>
    %24 = arith.maximumf %17, %23 : vector<8x128xf32>
    %25 = arith.mulf %22, %24 : vector<8x128xf32>
    %cst_15 = arith.constant 1.000000e+00 : f32
    %26 = vector.broadcast %cst_15 : f32 to vector<8x128xf32>
    %27 = arith.subf %26, %22 : vector<8x128xf32>
    %28 = arith.mulf %27, %11 : vector<8x128xf32>
    %29 = arith.addf %25, %28 : vector<8x128xf32>
    %30 = arith.truncf %29 : vector<8x128xf32> to vector<8x128xbf16>
    %c0_16 = arith.constant 0 : index
    %c0_17 = arith.constant 0 : index
    %31 = vector.load %arg6[%c0_16, %c0_17] : memref<128x128xbf16, #tpu.memory_space<vmem>>, vector<128x128xbf16>
    %cst_18 = arith.constant dense<0.000000e+00> : vector<8x128xf32>
    %32 = tpu.matmul %30, %31, %cst_18 {dimension_numbers = #tpu.dot_dimension_numbers<[1], [0], [0], [1], [0, 0, 1, 1], [], []>} : vector<8x128xbf16>, vector<128x128xbf16>, vector<8x128xf32> -> vector<8x128xf32>
    %c0_19 = arith.constant 0 : index
    %c0_20 = arith.constant 0 : index
    %33 = vector.load %arg7[%c0_19, %c0_20] : memref<1x128xf32, #tpu.memory_space<vmem>>, vector<1x128xf32>
    %34 = vector.broadcast %33 : vector<1x128xf32> to vector<8x128xf32>
    %35 = arith.addf %32, %34 : vector<8x128xf32>
    %36 = arith.truncf %35 : vector<8x128xf32> to vector<8x128xbf16>
    %c0_21 = arith.constant 0 : index
    %c0_22 = arith.constant 0 : index
    %37 = vector.load %arg8[%c0_21, %c0_22] : memref<128x128xbf16, #tpu.memory_space<vmem>>, vector<128x128xbf16>
    %cst_23 = arith.constant dense<0.000000e+00> : vector<8x128xf32>
    %38 = tpu.matmul %36, %37, %cst_23 {dimension_numbers = #tpu.dot_dimension_numbers<[1], [0], [0], [1], [0, 0, 1, 1], [], []>} : vector<8x128xbf16>, vector<128x128xbf16>, vector<8x128xf32> -> vector<8x128xf32>
    %c0_24 = arith.constant 0 : index
    %c0_25 = arith.constant 0 : index
    %39 = vector.load %arg9[%c0_24, %c0_25] : memref<1x128xf32, #tpu.memory_space<vmem>>, vector<1x128xf32>
    %40 = vector.broadcast %39 : vector<1x128xf32> to vector<8x128xf32>
    %41 = arith.addf %38, %40 : vector<8x128xf32>
    %c0_26 = arith.constant 0 : index
    %c0_27 = arith.constant 0 : index
    %42 = vector.load %arg10[%c0_26, %c0_27] : memref<8x128xf32, #tpu.memory_space<vmem>>, vector<8x128xf32>
    tpu.vector_store %arg10[%c0_26, %c0_27], %41 {strides = array<i32>} : memref<8x128xf32, #tpu.memory_space<vmem>>, vector<8x128xf32>,
    return
  }
  func.func @transform_0(%arg0: i32) -> (i32, i32, i32) {
    %c0_i32 = arith.constant 0 : i32
    %c0_i32_0 = arith.constant 0 : i32
    %c0_i32_1 = arith.constant 0 : i32
    return %arg0, %c0_i32, %c0_i32_0 : i32, i32, i32
  }
  func.func @transform_1(%arg0: i32) -> (i32, i32) {
    %c0_i32 = arith.constant 0 : i32
    %c0_i32_0 = arith.constant 0 : i32
    %c0_i32_1 = arith.constant 0 : i32
    return %c0_i32, %c0_i32_0 : i32, i32
  }
  func.func @transform_2(%arg0: i32) -> (i32, i32) {
    %c0_i32 = arith.constant 0 : i32
    %c0_i32_0 = arith.constant 0 : i32
    %c0_i32_1 = arith.constant 0 : i32
    return %c0_i32, %c0_i32_0 : i32, i32
  }
  func.func @transform_3(%arg0: i32) -> (i32, i32) {
    %c0_i32 = arith.constant 0 : i32
    %c0_i32_0 = arith.constant 0 : i32
    %c0_i32_1 = arith.constant 0 : i32
    return %c0_i32, %c0_i32_0 : i32, i32
  }
  func.func @transform_4(%arg0: i32) -> (i32, i32) {
    %c0_i32 = arith.constant 0 : i32
    %c0_i32_0 = arith.constant 0 : i32
    %c0_i32_1 = arith.constant 0 : i32
    return %c0_i32, %c0_i32_0 : i32, i32
  }
  func.func @transform_5(%arg0: i32) -> (i32, i32) {
    %c0_i32 = arith.constant 0 : i32
    %c0_i32_0 = arith.constant 0 : i32
    %c0_i32_1 = arith.constant 0 : i32
    return %c0_i32, %c0_i32_0 : i32, i32
  }
  func.func @transform_6(%arg0: i32) -> (i32, i32) {
    %c0_i32 = arith.constant 0 : i32
    %c0_i32_0 = arith.constant 0 : i32
    %c0_i32_1 = arith.constant 0 : i32
    return %c0_i32, %c0_i32_0 : i32, i32
  }
  func.func @transform_7(%arg0: i32) -> (i32, i32) {
    %c0_i32 = arith.constant 0 : i32
    %c0_i32_0 = arith.constant 0 : i32
    %c0_i32_1 = arith.constant 0 : i32
    return %c0_i32, %c0_i32_0 : i32, i32
  }
  func.func @transform_8(%arg0: i32) -> (i32, i32) {
    %c0_i32 = arith.constant 0 : i32
    %c0_i32_0 = arith.constant 0 : i32
    %c0_i32_1 = arith.constant 0 : i32
    return %c0_i32, %c0_i32_0 : i32, i32
  }
  func.func @transform_9(%arg0: i32) -> (i32, i32) {
    %c0_i32 = arith.constant 0 : i32
    %c0_i32_0 = arith.constant 0 : i32
    return %arg0, %c0_i32 : i32, i32
  }
}

</mosaic_0001>

<llo_original>
// kernel: tpu_custom_call.1
$region0: #{tpu_custom_call.1}
  #allocation0 [shape = 'u32[]', space=smem, size = 0x4, offset = 0x4, fixed_abs, tag = 'smem constant byte address 0x4 - core index']
  #allocation1 [shape = 'u32[144,128]{1,0:T(1,128)}', space=vmem, size = 0x12000, scoped, tag = 'internal scratch']
  %s0 = inlined_call_operand.hbm [shape: bf16[16,16,128], index: 0, kind: input, shape index: {}]
  %s1 = inlined_call_operand.hbm [shape: f32[16,128], index: 1, kind: input, shape index: {}]
  %s2 = inlined_call_operand.hbm [shape: bf16[128,128], index: 2, kind: input, shape index: {}]
  %s3 = inlined_call_operand.hbm [shape: bf16[128,128], index: 3, kind: input, shape index: {}]
  %s4 = inlined_call_operand.vmem [shape: f32[1,128], index: 4, kind: input, shape index: {}]
  %s5 = inlined_call_operand.hbm [shape: bf16[128,128], index: 5, kind: input, shape index: {}]
  %s6 = inlined_call_operand.vmem [shape: f32[1,128], index: 6, kind: input, shape index: {}]
  %s7 = inlined_call_operand.hbm [shape: bf16[128,128], index: 7, kind: input, shape index: {}]
  %s8 = inlined_call_operand.vmem [shape: f32[1,128], index: 8, kind: input, shape index: {}]
  %s9 = inlined_call_operand.hbm [shape: f32[16,128], index: 9, kind: output, shape index: {}]
  %s10 = sld [smem:[#allocation0]]
  $region93: #{tpu_custom_call.1} parent=0
    _
  %s12 = ssub.s32 1, %s10
  %s13 = scalar_select 0, %s12, %s10
  $region1: #{tpu_custom_call.1} parent=0
    #allocation2 [shape = 'u8[65536]{0}', space=vmem, size = 0x10000, scoped, tag = 'input window, operand 0']
    #allocation3 [shape = 's32[2]{0}', space=sflag, size = 0x8, scoped, tag = 'scoped memory for tpu_custom_call.1']
    #allocation4 [shape = 's32[2]{0}', space=sflag, size = 0x8, scoped, tag = 'scoped memory for tpu_custom_call.1']
    #allocation5 [shape = 'u8[8192]{0}', space=vmem, size = 0x2000, scoped, tag = 'input window, operand 1, single buffered']
    #allocation6 [shape = 's32[1]{0}', space=sflag, size = 0x4, scoped, tag = 'scoped memory for tpu_custom_call.1']
    #allocation7 [shape = 'u8[32768]{0}', space=vmem, size = 0x8000, scoped, tag = 'input window, operand 2, single buffered']
    #allocation8 [shape = 'u8[32768]{0}', space=vmem, size = 0x8000, scoped, tag = 'input window, operand 3, single buffered']
    #allocation9 [shape = 's32[1]{0}', space=sflag, size = 0x4, scoped, tag = 'scoped memory for tpu_custom_call.1']
    #allocation10 [shape = 'u8[32768]{0}', space=vmem, size = 0x8000, scoped, tag = 'input window, operand 5, single buffered']
    #allocation11 [shape = 'u8[32768]{0}', space=vmem, size = 0x8000, scoped, tag = 'input window, operand 7, single buffered']
    #allocation12 [shape = 's32[1]{0}', space=sflag, size = 0x4, scoped, tag = 'scoped memory for tpu_custom_call.1']
    #allocation13 [shape = 'u8[8192]{0}', space=vmem, size = 0x2000, scoped, tag = 'output window, operand 0']
    %14 = vsyncpa [#allocation3], 0
    %s15 = scalar_lea.sflag [#allocation3], 1
    %16 = vsyncpa %s15, 0
    %17 = vsyncpa [#allocation6], 0
    %18 = vsyncpa [#allocation9], 0
    %19 = vsyncpa [#allocation12], 0
    %20 = vsyncpa [#allocation4], 0
    %s21 = scalar_lea.sflag [#allocation4], 1
    %22 = vsyncpa %s21, 0
    loop: start=0, step=1, limit=4
    $region2: #{tpu_custom_call.1} parent=1 // loop_pre_header
      _
    $region3: #{tpu_custom_call.1} parent=1 // loop_header
      %s24 = sphi 0, %s28
      %p25 = scmp.ge.s32.totalorder %s24, 4
      %s34 = sphi 0, %s36
      %s37 = sphi 0, %s34
      %s38 = sphi 0, %s37
      %s54 = sphi 0, %s38
      %s58 = sphi 0, %s58
      %s60 = sphi 0, %s58
      %s61 = sphi 0, %s60
      %s75 = sphi 0, %s61
      %s79 = sphi 0, %s79
      %s81 = sphi 0, %s79
      %s82 = sphi 0, %s81
      %s96 = sphi 0, %s82
      %s100 = sphi 0, %s100
      %s102 = sphi 0, %s100
      %s103 = sphi 0, %s102
      %s117 = sphi 0, %s103
      %s121 = sphi 0, %s121
      %s123 = sphi 0, %s121
      %s124 = sphi 0, %s123
      %s138 = sphi 0, %s124
      %s142 = sphi 0, %s142
      %s144 = sphi 0, %s142
      %s145 = sphi 0, %s144
      %s159 = sphi 0, %s145
      %s163 = sphi 0, %s163
      %s165 = sphi 0, %s163
      %s166 = sphi 0, %s165
      %s180 = sphi 0, %s166
      %s184 = sphi 0, %s184
      %s186 = sphi 0, %s184
      %s187 = sphi 0, %s186
      %s201 = sphi 0, %s187
      %s205 = sphi 0, %s205
      %s207 = sphi 0, %s205
      %s208 = sphi 0, %s207
      %s222 = sphi 0, %s208
      %s228 = sphi 0, %s230
      %s231 = sphi 0, %s228
      %s232 = sphi 0, %s231
      %s248 = sphi 0, %s232
    $region4: #{tpu_custom_call.1} parent=1 // loop_header_branch
      %27 = sbr.rel (%p25) target = $region8
    $region5: #{tpu_custom_call.1} parent=1 // loop_body
      %s29 = ssub.s32 %s24, 1
      %s30 = ssub.s32 %s24, 2
      %s31 = sadd.s32 %s24, 1
      %s32 = ssub.s32 %s24, %s31
      %p33 = scmp.eq.s32.totalorder %s32, 0
      %s35 = sadd.s32 %s34, 1
      %s36 = scalar_select %p33, %s34, %s35
      %p39 = pneg %p33
      %p40 = scmp.eq.s32.totalorder %s24, 1
      %p41 = por %p39, %p40
      %p42 = scmp.ne.s32.totalorder %s34, %s37
      %p43 = scmp.eq.s32.totalorder %s24, 0
      %p44 = por %p42, %p43
      %p45 = scmp.ne.s32.totalorder %s34, %s37
      %p46 = scmp.eq.s32.totalorder %s29, 1
      %p47 = por %p45, %p46
      %p48 = scmp.ne.s32.totalorder %s37, %s38
      %p49 = scmp.eq.s32.totalorder %s29, 0
      %p50 = por %p48, %p49
      %p51 = scmp.ne.s32.totalorder %s37, %s38
      %p52 = scmp.eq.s32.totalorder %s30, 1
      %p53 = por %p51, %p52
      %p55 = scmp.ne.s32.totalorder %s38, %s54
      %p56 = scmp.eq.s32.totalorder %s30, 0
      %p57 = por %p55, %p56
      %s59 = sadd.s32 %s58, 1
      %p62 = scmp.eq.s32.totalorder %s24, 1
      %p63 = scmp.ne.s32.totalorder %s58, %s60
      %p64 = scmp.eq.s32.totalorder %s24, 0
      %p65 = por %p63, %p64
      %p66 = scmp.ne.s32.totalorder %s58, %s60
      %p67 = scmp.eq.s32.totalorder %s29, 1
      %p68 = por %p66, %p67
      %p69 = scmp.ne.s32.totalorder %s60, %s61
      %p70 = scmp.eq.s32.totalorder %s29, 0
      %p71 = por %p69, %p70
      %p72 = scmp.ne.s32.totalorder %s60, %s61
      %p73 = scmp.eq.s32.totalorder %s30, 1
      %p74 = por %p72, %p73
      %p76 = scmp.ne.s32.totalorder %s61, %s75
      %p77 = scmp.eq.s32.totalorder %s30, 0
      %p78 = por %p76, %p77
      %s80 = sadd.s32 %s79, 1
      %p83 = scmp.eq.s32.totalorder %s24, 1
      %p84 = scmp.ne.s32.totalorder %s79, %s81
      %p85 = scmp.eq.s32.totalorder %s24, 0
      %p86 = por %p84, %p85
      %p87 = scmp.ne.s32.totalorder %s79, %s81
      %p88 = scmp.eq.s32.totalorder %s29, 1
      %p89 = por %p87, %p88
      %p90 = scmp.ne.s32.totalorder %s81, %s82
      %p91 = scmp.eq.s32.totalorder %s29, 0
      %p92 = por %p90, %p91
      %p93 = scmp.ne.s32.totalorder %s81, %s82
      %p94 = scmp.eq.s32.totalorder %s30, 1
      %p95 = por %p93, %p94
      %p97 = scmp.ne.s32.totalorder %s82, %s96
      %p98 = scmp.eq.s32.totalorder %s30, 0
      %p99 = por %p97, %p98
      %s101 = sadd.s32 %s100, 1
      %p104 = scmp.eq.s32.totalorder %s24, 1
      %p105 = scmp.ne.s32.totalorder %s100, %s102
      %p106 = scmp.eq.s32.totalorder %s24, 0
      %p107 = por %p105, %p106
      %p108 = scmp.ne.s32.totalorder %s100, %s102
      %p109 = scmp.eq.s32.totalorder %s29, 1
      %p110 = por %p108, %p109
      %p111 = scmp.ne.s32.totalorder %s102, %s103
      %p112 = scmp.eq.s32.totalorder %s29, 0
      %p113 = por %p111, %p112
      %p114 = scmp.ne.s32.totalorder %s102, %s103
      %p115 = scmp.eq.s32.totalorder %s30, 1
      %p116 = por %p114, %p115
      %p118 = scmp.ne.s32.totalorder %s103, %s117
      %p119 = scmp.eq.s32.totalorder %s30, 0
      %p120 = por %p118, %p119
      %s122 = sadd.s32 %s121, 1
      %p125 = scmp.eq.s32.totalorder %s24, 1
      %p126 = scmp.ne.s32.totalorder %s121, %s123
      %p127 = scmp.eq.s32.totalorder %s24, 0
      %p128 = por %p126, %p127
      %p129 = scmp.ne.s32.totalorder %s121, %s123
      %p130 = scmp.eq.s32.totalorder %s29, 1
      %p131 = por %p129, %p130
      %p132 = scmp.ne.s32.totalorder %s123, %s124
      %p133 = scmp.eq.s32.totalorder %s29, 0
      %p134 = por %p132, %p133
      %p135 = scmp.ne.s32.totalorder %s123, %s124
      %p136 = scmp.eq.s32.totalorder %s30, 1
      %p137 = por %p135, %p136
      %p139 = scmp.ne.s32.totalorder %s124, %s138
      %p140 = scmp.eq.s32.totalorder %s30, 0
      %p141 = por %p139, %p140
      %s143 = sadd.s32 %s142, 1
      %p146 = scmp.eq.s32.totalorder %s24, 1
      %p147 = scmp.ne.s32.totalorder %s142, %s144
      %p148 = scmp.eq.s32.totalorder %s24, 0
      %p149 = por %p147, %p148
      %p150 = scmp.ne.s32.totalorder %s142, %s144
      %p151 = scmp.eq.s32.totalorder %s29, 1
      %p152 = por %p150, %p151
      %p153 = scmp.ne.s32.totalorder %s144, %s145
      %p154 = scmp.eq.s32.totalorder %s29, 0
      %p155 = por %p153, %p154
      %p156 = scmp.ne.s32.totalorder %s144, %s145
      %p157 = scmp.eq.s32.totalorder %s30, 1
      %p158 = por %p156, %p157
      %p160 = scmp.ne.s32.totalorder %s145, %s159
      %p161 = scmp.eq.s32.totalorder %s30, 0
      %p162 = por %p160, %p161
      %s164 = sadd.s32 %s163, 1
      %p167 = scmp.eq.s32.totalorder %s24, 1
      %p168 = scmp.ne.s32.totalorder %s163, %s165
      %p169 = scmp.eq.s32.totalorder %s24, 0
      %p170 = por %p168, %p169
      %p171 = scmp.ne.s32.totalorder %s163, %s165
      %p172 = scmp.eq.s32.totalorder %s29, 1
      %p173 = por %p171, %p172
      %p174 = scmp.ne.s32.totalorder %s165, %s166
      %p175 = scmp.eq.s32.totalorder %s29, 0
      %p176 = por %p174, %p175
      %p177 = scmp.ne.s32.totalorder %s165, %s166
      %p178 = scmp.eq.s32.totalorder %s30, 1
      %p179 = por %p177, %p178
      %p181 = scmp.ne.s32.totalorder %s166, %s180
      %p182 = scmp.eq.s32.totalorder %s30, 0
      %p183 = por %p181, %p182
      %s185 = sadd.s32 %s184, 1
      %p188 = scmp.eq.s32.totalorder %s24, 1
      %p189 = scmp.ne.s32.totalorder %s184, %s186
      %p190 = scmp.eq.s32.totalorder %s24, 0
      %p191 = por %p189, %p190
      %p192 = scmp.ne.s32.totalorder %s184, %s186
      %p193 = scmp.eq.s32.totalorder %s29, 1
      %p194 = por %p192, %p193
      %p195 = scmp.ne.s32.totalorder %s186, %s187
      %p196 = scmp.eq.s32.totalorder %s29, 0
      %p197 = por %p195, %p196
      %p198 = scmp.ne.s32.totalorder %s186, %s187
      %p199 = scmp.eq.s32.totalorder %s30, 1
      %p200 = por %p198, %p199
      %p202 = scmp.ne.s32.totalorder %s187, %s201
      %p203 = scmp.eq.s32.totalorder %s30, 0
      %p204 = por %p202, %p203
      %s206 = sadd.s32 %s205, 1
      %p209 = scmp.eq.s32.totalorder %s24, 1
      %p210 = scmp.ne.s32.totalorder %s205, %s207
      %p211 = scmp.eq.s32.totalorder %s24, 0
      %p212 = por %p210, %p211
      %p213 = scmp.ne.s32.totalorder %s205, %s207
      %p214 = scmp.eq.s32.totalorder %s29, 1
      %p215 = por %p213, %p214
      %p216 = scmp.ne.s32.totalorder %s207, %s208
      %p217 = scmp.eq.s32.totalorder %s29, 0
      %p218 = por %p216, %p217
      %p219 = scmp.ne.s32.totalorder %s207, %s208
      %p220 = scmp.eq.s32.totalorder %s30, 1
      %p221 = por %p219, %p220
      %p223 = scmp.ne.s32.totalorder %s208, %s222
      %p224 = scmp.eq.s32.totalorder %s30, 0
      %p225 = por %p223, %p224
      %s226 = ssub.s32 %s24, %s31
      %p227 = scmp.eq.s32.totalorder %s226, 0
      %s229 = sadd.s32 %s228, 1
      %s230 = scalar_select %p227, %s228, %s229
      %p233 = pneg %p227
      %p234 = scmp.eq.s32.totalorder %s24, 1
      %p235 = por %p233, %p234
      %p236 = scmp.ne.s32.totalorder %s228, %s231
      %p237 = scmp.eq.s32.totalorder %s24, 0
      %p238 = por %p236, %p237
      %p239 = scmp.ne.s32.totalorder %s228, %s231
      %p240 = scmp.eq.s32.totalorder %s29, 1
      %p241 = por %p239, %p240
      %p242 = scmp.ne.s32.totalorder %s231, %s232
      %p243 = scmp.eq.s32.totalorder %s29, 0
      %p244 = por %p242, %p243
      %p245 = scmp.ne.s32.totalorder %s231, %s232
      %p246 = scmp.eq.s32.totalorder %s30, 1
      %p247 = por %p245, %p246
      %p249 = scmp.ne.s32.totalorder %s232, %s248
      %p250 = scmp.eq.s32.totalorder %s30, 0
      %p251 = por %p249, %p250
      %p252 = scmp.le.s32.totalorder 1, %s24
      %p253 = scmp.lt.s32.totalorder %s24, 3
      %p254 = pnand %p252, %p253
      %p255 = pneg %p254
      // Predicated region
      $region9: #{tpu_custom_call.1} parent=5 // pred_check
        _
      $region10: #{tpu_custom_call.1} parent=5 // pred_check_branch
        %257 = sbr.rel (%p254) target = $region12
      $region11: #{tpu_custom_call.1} parent=5 // pred_region
        %s258 = ssub.s32 %s24, 1
        // Predicated region
        $region13: #{tpu_custom_call.1} parent=11 // pred_check
          %p259 = pneg %p71
        $region14: #{tpu_custom_call.1} parent=11 // pred_check_branch
          %261 = sbr.rel (%p259) target = $region16
        $region15: #{tpu_custom_call.1} parent=11 // pred_region
          %s263 = ssub.s32 256, 256
          %264 = vsyncadd [#allocation6], %s263
          %s265 = sshll.u32 [#allocation5], 4
          %s266 = int_to_ptr.vmem [resolvable:$true] %s265
          %271 = dma.hbm_to_vmem [thread:$0]  %s1, 256, %s266, [#allocation6], 128, 128, 8
        $region16: #{tpu_custom_call.1} parent=11 // pred_fallthru
          _
        // Predicated region
        $region17: #{tpu_custom_call.1} parent=11 // pred_check
          %p272 = pneg %p92
        $region18: #{tpu_custom_call.1} parent=11 // pred_check_branch
          %274 = sbr.rel (%p272) target = $region20
        $region19: #{tpu_custom_call.1} parent=11 // pred_region
          %s276 = ssub.s32 1024, 1024
          %277 = vsyncadd [#allocation6], %s276
          %s278 = sshll.u32 [#allocation7], 4
          %s279 = int_to_ptr.vmem [resolvable:$true] %s278
          %284 = dma.hbm_to_vmem [thread:$0]  %s2, 1024, %s279, [#allocation6], 64, 64, 4
        $region20: #{tpu_custom_call.1} parent=11 // pred_fallthru
          _
        // Predicated region
        $region21: #{tpu_custom_call.1} parent=11 // pred_check
          %p285 = pneg %p113
        $region22: #{tpu_custom_call.1} parent=11 // pred_check_branch
          %287 = sbr.rel (%p285) target = $region24
        $region23: #{tpu_custom_call.1} parent=11 // pred_region
          %s289 = ssub.s32 1024, 1024
          %290 = vsyncadd [#allocation9], %s289
          %s291 = sshll.u32 [#allocation8], 4
          %s292 = int_to_ptr.vmem [resolvable:$true] %s291
          %297 = dma.hbm_to_vmem [thread:$0]  %s3, 1024, %s292, [#allocation9], 64, 64, 4
        $region24: #{tpu_custom_call.1} parent=11 // pred_fallthru
          _
        // Predicated region
        $region25: #{tpu_custom_call.1} parent=11 // pred_check
          %p298 = pneg %p134
        $region26: #{tpu_custom_call.1} parent=11 // pred_check_branch
          %300 = sbr.rel (%p298) target = $region28
        $region27: #{tpu_custom_call.1} parent=11 // pred_region
          _
        $region28: #{tpu_custom_call.1} parent=11 // pred_fallthru
          _
        // Predicated region
        $region29: #{tpu_custom_call.1} parent=11 // pred_check
          %p301 = pneg %p155
        $region30: #{tpu_custom_call.1} parent=11 // pred_check_branch
          %303 = sbr.rel (%p301) target = $region32
        $region31: #{tpu_custom_call.1} parent=11 // pred_region
          %s305 = ssub.s32 1024, 1024
          %306 = vsyncadd [#allocation9], %s305
          %s307 = sshll.u32 [#allocation10], 4
          %s308 = int_to_ptr.vmem [resolvable:$true] %s307
          %313 = dma.hbm_to_vmem [thread:$0]  %s5, 1024, %s308, [#allocation9], 64, 64, 4
        $region32: #{tpu_custom_call.1} parent=11 // pred_fallthru
          _
        // Predicated region
        $region33: #{tpu_custom_call.1} parent=11 // pred_check
          %p314 = pneg %p176
        $region34: #{tpu_custom_call.1} parent=11 // pred_check_branch
          %316 = sbr.rel (%p314) target = $region36
        $region35: #{tpu_custom_call.1} parent=11 // pred_region
          _
        $region36: #{tpu_custom_call.1} parent=11 // pred_fallthru
          _
        // Predicated region
        $region37: #{tpu_custom_call.1} parent=11 // pred_check
          %p317 = pneg %p197
        $region38: #{tpu_custom_call.1} parent=11 // pred_check_branch
          %319 = sbr.rel (%p317) target = $region40
        $region39: #{tpu_custom_call.1} parent=11 // pred_region
          %s321 = ssub.s32 1024, 1024
          %322 = vsyncadd [#allocation12], %s321
          %s323 = sshll.u32 [#allocation11], 4
          %s324 = int_to_ptr.vmem [resolvable:$true] %s323
          %329 = dma.hbm_to_vmem [thread:$0]  %s7, 1024, %s324, [#allocation12], 64, 64, 4
        $region40: #{tpu_custom_call.1} parent=11 // pred_fallthru
          _
        // Predicated region
        $region41: #{tpu_custom_call.1} parent=11 // pred_check
          %p330 = pneg %p218
        $region42: #{tpu_custom_call.1} parent=11 // pred_check_branch
          %332 = sbr.rel (%p330) target = $region44
        $region43: #{tpu_custom_call.1} parent=11 // pred_region
          _
        $region44: #{tpu_custom_call.1} parent=11 // pred_fallthru
          _
      $region12: #{tpu_custom_call.1} parent=5 // pred_fallthru
        _
      %p333 = scmp.lt.s32.totalorder %s24, 2
      // Predicated region
      $region45: #{tpu_custom_call.1} parent=5 // pred_check
        %p334 = pneg %p333
      $region46: #{tpu_custom_call.1} parent=5 // pred_check_branch
        %336 = sbr.rel (%p334) target = $region48
      $region47: #{tpu_custom_call.1} parent=5 // pred_region
        // Predicated region
        $region49: #{tpu_custom_call.1} parent=47 // pred_check
          %p337 = pneg %p44
        $region50: #{tpu_custom_call.1} parent=47 // pred_check_branch
          %339 = sbr.rel (%p337) target = $region52
        $region51: #{tpu_custom_call.1} parent=47 // pred_region
          %s340 = sand.u32 %s34, 1
          %s341 = scalar_lea.sflag [#allocation3], %s340
          %s342 = sand.u32 %s34, 1
          %s343 = smul.addr %s342, 64
          %s344 = scalar_lea.vmem [#allocation2], %s343
          %s345 = smul.u32 8, %s24
          %s347 = ssub.s32 1024, 1024
          %348 = vsyncadd %s341, %s347
          %s349 = smul.addr %s345, 2
          %s350 = smul.addr %s349, 64
          %s351 = scalar_lea.hbm %s0, %s350
          %s352 = sshll.u32 %s344, 4
          %s353 = int_to_ptr.vmem [resolvable:$true] %s352
          %358 = dma.hbm_to_vmem [thread:$0]  %s351, 1024, %s353, %s341, 64, 64, 4
        $region52: #{tpu_custom_call.1} parent=47 // pred_fallthru
          _
      $region48: #{tpu_custom_call.1} parent=5 // pred_fallthru
        _
      %p359 = scmp.le.s32.totalorder 1, %s24
      %p360 = scmp.lt.s32.totalorder %s24, 3
      %p361 = pnand %p359, %p360
      %p362 = pneg %p361
      // Predicated region
      $region53: #{tpu_custom_call.1} parent=5 // pred_check
        _
      $region54: #{tpu_custom_call.1} parent=5 // pred_check_branch
        %364 = sbr.rel (%p361) target = $region56
      $region55: #{tpu_custom_call.1} parent=5 // pred_region
        %s365 = ssub.s32 %s24, 1
        %s366 = sand.u32 %s37, 1
        %s367 = scalar_lea.sflag [#allocation3], %s366
        %s368 = sand.u32 %s37, 1
        %s369 = smul.addr %s368, 64
        %s370 = scalar_lea.vmem [#allocation2], %s369
        // Predicated region
        $region57: #{tpu_custom_call.1} parent=55 // pred_check
          %p371 = pneg %p50
        $region58: #{tpu_custom_call.1} parent=55 // pred_check_branch
          %373 = sbr.rel (%p371) target = $region60
        $region59: #{tpu_custom_call.1} parent=55 // pred_region
          %374 = dma.done %s367, 1024
        $region60: #{tpu_custom_call.1} parent=55 // pred_fallthru
          _
        // Predicated region
        $region61: #{tpu_custom_call.1} parent=55 // pred_check
          %p375 = pneg %p71
        $region62: #{tpu_custom_call.1} parent=55 // pred_check_branch
          %377 = sbr.rel (%p375) target = $region64
        $region63: #{tpu_custom_call.1} parent=55 // pred_region
          %378 = dma.done [#allocation6], 256
        $region64: #{tpu_custom_call.1} parent=55 // pred_fallthru
          _
        // Predicated region
        $region65: #{tpu_custom_call.1} parent=55 // pred_check
          %p379 = pneg %p92
        $region66: #{tpu_custom_call.1} parent=55 // pred_check_branch
          %381 = sbr.rel (%p379) target = $region68
        $region67: #{tpu_custom_call.1} parent=55 // pred_region
          %382 = dma.done [#allocation6], 1024
        $region68: #{tpu_custom_call.1} parent=55 // pred_fallthru
          _
        // Predicated region
        $region69: #{tpu_custom_call.1} parent=55 // pred_check
          %p383 = pneg %p113
        $region70: #{tpu_custom_call.1} parent=55 // pred_check_branch
          %385 = sbr.rel (%p383) target = $region72
        $region71: #{tpu_custom_call.1} parent=55 // pred_region
          %386 = dma.done [#allocation9], 1024
        $region72: #{tpu_custom_call.1} parent=55 // pred_fallthru
          _
        // Predicated region
        $region73: #{tpu_custom_call.1} parent=55 // pred_check
          %p387 = pneg %p155
        $region74: #{tpu_custom_call.1} parent=55 // pred_check_branch
          %389 = sbr.rel (%p387) target = $region76
        $region75: #{tpu_custom_call.1} parent=55 // pred_region
          %390 = dma.done [#allocation9], 1024
        $region76: #{tpu_custom_call.1} parent=55 // pred_fallthru
          _
        // Predicated region
        $region77: #{tpu_custom_call.1} parent=55 // pred_check
          %p391 = pneg %p197
        $region78: #{tpu_custom_call.1} parent=55 // pred_check_branch
          %393 = sbr.rel (%p391) target = $region80
        $region79: #{tpu_custom_call.1} parent=55 // pred_region
          %394 = dma.done [#allocation12], 1024
        $region80: #{tpu_custom_call.1} parent=55 // pred_fallthru
          _
        %s395 = sand.u32 %s37, 1
        %s396 = scalar_lea.sflag [#allocation3], %s395
        %s397 = sand.u32 %s37, 1
        %s398 = smul.addr %s397, 64
        %s399 = scalar_lea.vmem [#allocation2], %s398
        %p400 = pneg %p50
        %p401 = pneg %p47
        %p402 = pneg %p71
        %p403 = pneg %p68
        %p404 = pneg %p92
        %p405 = pneg %p89
        %p406 = pneg %p113
        %p407 = pneg %p110
        %p408 = pneg %p134
        %p409 = pneg %p131
        %p410 = pneg %p155
        %p411 = pneg %p152
        %p412 = pneg %p176
        %p413 = pneg %p173
        %p414 = pneg %p197
        %p415 = pneg %p194
        %p416 = pneg %p218
        %p417 = pneg %p215
        %p418 = pneg %p244
        %p419 = pneg %p241
        %s420 = sand.u32 %s231, 1
        %s421 = scalar_lea.sflag [#allocation4], %s420
        %s422 = sand.u32 %s231, 1
        %s423 = smul.addr %s422, 8
        %s424 = scalar_lea.vmem [#allocation13], %s423
        %s425 = smul.u32 8, %s29
        %v427 = vld [vmem:[%s370] sm:$0xf]
        %v428 = vld [vmem:[%s370 + $0x4] sm:$0xf]
        %v429 = vld [vmem:[%s370 + $0x8] sm:$0xf]
        %v430 = vld [vmem:[%s370 + $0xc] sm:$0xf]
        %v431 = vld [vmem:[%s370 + $0x10] sm:$0xf]
        %v432 = vld [vmem:[%s370 + $0x14] sm:$0xf]
        %v433 = vld [vmem:[%s370 + $0x18] sm:$0xf]
        %v434 = vld [vmem:[%s370 + $0x1c] sm:$0xf]
        %v435 = vld [vmem:[%s370 + $0x20] sm:$0xf]
        %v436 = vld [vmem:[%s370 + $0x24] sm:$0xf]
        %v437 = vld [vmem:[%s370 + $0x28] sm:$0xf]
        %v438 = vld [vmem:[%s370 + $0x2c] sm:$0xf]
        %v439 = vld [vmem:[%s370 + $0x30] sm:$0xf]
        %v440 = vld [vmem:[%s370 + $0x34] sm:$0xf]
        %v441 = vld [vmem:[%s370 + $0x38] sm:$0xf]
        %v442 = vld [vmem:[%s370 + $0x3c] sm:$0xf]
        %v443 = vld [vmem:[#allocation7] sm:$0xf]
        %v444 = vld [vmem:[#allocation7 + $0x4] sm:$0xf]
        %v445 = vld [vmem:[#allocation7 + $0x8] sm:$0xf]
        %v446 = vld [vmem:[#allocation7 + $0xc] sm:$0xf]
        %v447 = vld [vmem:[#allocation7 + $0x10] sm:$0xf]
        %v448 = vld [vmem:[#allocation7 + $0x14] sm:$0xf]
        %v449 = vld [vmem:[#allocation7 + $0x18] sm:$0xf]
        %v450 = vld [vmem:[#allocation7 + $0x1c] sm:$0xf]
        %v451 = vld [vmem:[#allocation7 + $0x20] sm:$0xf]
        %v452 = vld [vmem:[#allocation7 + $0x24] sm:$0xf]
        %v453 = vld [vmem:[#allocation7 + $0x28] sm:$0xf]
        %v454 = vld [vmem:[#allocation7 + $0x2c] sm:$0xf]
        %v455 = vld [vmem:[#allocation7 + $0x30] sm:$0xf]
        %v456 = vld [vmem:[#allocation7 + $0x34] sm:$0xf]
        %v457 = vld [vmem:[#allocation7 + $0x38] sm:$0xf]
        %v458 = vld [vmem:[#allocation7 + $0x3c] sm:$0xf]
        %v475 = vunpack.c.l.b16 %v427
        %v476 = vunpack.c.l.b16 %v428
        %v477 = vunpack.c.l.b16 %v429
        %v478 = vunpack.c.l.b16 %v430
        %v479 = vunpack.c.l.b16 %v431
        %v480 = vunpack.c.l.b16 %v432
        %v481 = vunpack.c.l.b16 %v433
        %v482 = vunpack.c.l.b16 %v434
        %v483 = vunpack.c.l.b16 %v435
        %v484 = vunpack.c.l.b16 %v436
        %v485 = vunpack.c.l.b16 %v437
        %v486 = vunpack.c.l.b16 %v438
        %v487 = vunpack.c.l.b16 %v439
        %v488 = vunpack.c.l.b16 %v440
        %v489 = vunpack.c.l.b16 %v441
        %v490 = vunpack.c.l.b16 %v442
        %v491 = vpack.c.b16 %v476, %v475
        %v492 = vpack.c.b16 %v478, %v477
        %v493 = vpack.c.b16 %v480, %v479
        %v494 = vpack.c.b16 %v482, %v481
        %v495 = vpack.c.b16 %v484, %v483
        %v496 = vpack.c.b16 %v486, %v485
        %v497 = vpack.c.b16 %v488, %v487
        %v498 = vpack.c.b16 %v490, %v489
        %v523 = vunpack.c.l.b16 %v443
        %v524 = vunpack.c.l.b16 %v444
        %v525 = vunpack.c.l.b16 %v445
        %v526 = vunpack.c.l.b16 %v446
        %v527 = vunpack.c.l.b16 %v447
        %v528 = vunpack.c.l.b16 %v448
        %v529 = vunpack.c.l.b16 %v449
        %v530 = vunpack.c.l.b16 %v450
        %v531 = vunpack.c.l.b16 %v451
        %v532 = vunpack.c.l.b16 %v452
        %v533 = vunpack.c.l.b16 %v453
        %v534 = vunpack.c.l.b16 %v454
        %v535 = vunpack.c.l.b16 %v455
        %v536 = vunpack.c.l.b16 %v456
        %v537 = vunpack.c.l.b16 %v457
        %v538 = vunpack.c.l.b16 %v458
        %v539 = vpack.c.b16 %v524, %v523
        %v540 = vpack.c.b16 %v526, %v525
        %v541 = vpack.c.b16 %v528, %v527
        %v542 = vpack.c.b16 %v530, %v529
        %v543 = vpack.c.b16 %v532, %v531
        %v544 = vpack.c.b16 %v534, %v533
        %v545 = vpack.c.b16 %v536, %v535
        %v546 = vpack.c.b16 %v538, %v537
        %555 = vmatprep.subr.bf16.mxu0 0
        %556 = vmatpush1.bf16.msra.mxu0 %v546
        %557 = vmatprep.subr.bf16.mxu0 0
        %558 = vmatpush1.bf16.msra.mxu0 %v545
        %559 = vmatprep.subr.bf16.mxu0 0
        %560 = vmatpush1.bf16.msra.mxu0 %v544
        %561 = vmatprep.subr.bf16.mxu0 0
        %562 = vmatpush1.bf16.msra.mxu0 %v543
        %563 = vmatprep.subr.bf16.mxu0 0
        %564 = vmatpush1.bf16.msra.mxu0 %v542
        %565 = vmatprep.subr.bf16.mxu0 0
        %566 = vmatpush1.bf16.msra.mxu0 %v541
        %567 = vmatprep.subr.bf16.mxu0 0
        %568 = vmatpush1.bf16.msra.mxu0 %v540
        %569 = vmatprep.subr.bf16.mxu0 0
        %570 = vmatpush1.bf16.msra.mxu0 %v539
        %571 = vmatprep.subr.bf16.mxu0 0
        %572 = vmatpush2.bf16.msra.mxu0 0
        %573 = vmatprep.subr.bf16.mxu0 0
        %574 = vmatpush2.bf16.msra.mxu0 0
        %575 = vmatprep.subr.bf16.mxu0 0
        %576 = vmatpush2.bf16.msra.mxu0 0
        %577 = vmatprep.subr.bf16.mxu0 0
        %578 = vmatpush2.bf16.msra.mxu0 0
        %579 = vmatprep.subr.bf16.mxu0 0
        %580 = vmatpush2.bf16.msra.mxu0 0
        %581 = vmatprep.subr.bf16.mxu0 0
        %582 = vmatpush2.bf16.msra.mxu0 0
        %583 = vmatprep.subr.bf16.mxu0 0
        %584 = vmatpush2.bf16.msra.mxu0 0
        %585 = vmatprep.subr.bf16.mxu0 0
        %586 = vmatpush2.bf16.msra.mxu0 0
        %587 = vmatprep.mubr.bf16.mxu0 0
        %588 = vmatmul.mubr.bf16.gmra.mxu0 %v491
        %v589 = vpop.f32.mrf.mxu0
        %v590 = vadd.f32 0.0, %v589
        %v591 = vpop.f32.mrf.mxu0
        %v592 = vpop.f32.mrf.mxu0
        %v593 = vadd.f32 0.0, %v592
        %v594 = vpop.f32.mrf.mxu0
        %595 = vmatprep.mubr.bf16.mxu0 0
        %596 = vmatmul.mubr.bf16.gmra.mxu0 %v492
        %v597 = vpop.f32.mrf.mxu0
        %v598 = vadd.f32 0.0, %v597
        %v599 = vpop.f32.mrf.mxu0
        %v600 = vpop.f32.mrf.mxu0
        %v601 = vadd.f32 0.0, %v600
        %v602 = vpop.f32.mrf.mxu0
        %603 = vmatprep.mubr.bf16.mxu0 0
        %604 = vmatmul.mubr.bf16.gmra.mxu0 %v493
        %v605 = vpop.f32.mrf.mxu0
        %v606 = vadd.f32 0.0, %v605
        %v607 = vpop.f32.mrf.mxu0
        %v608 = vpop.f32.mrf.mxu0
        %v609 = vadd.f32 0.0, %v608
        %v610 = vpop.f32.mrf.mxu0
        %611 = vmatprep.mubr.bf16.mxu0 0
        %612 = vmatmul.mubr.bf16.gmra.mxu0 %v494
        %v613 = vpop.f32.mrf.mxu0
        %v614 = vadd.f32 0.0, %v613
        %v615 = vpop.f32.mrf.mxu0
        %v616 = vpop.f32.mrf.mxu0
        %v617 = vadd.f32 0.0, %v616
        %v618 = vpop.f32.mrf.mxu0
        %619 = vmatprep.mubr.bf16.mxu0 0
        %620 = vmatmul.mubr.bf16.gmra.mxu0 %v495
        %v621 = vpop.f32.mrf.mxu0
        %v622 = vadd.f32 0.0, %v621
        %v623 = vpop.f32.mrf.mxu0
        %v624 = vpop.f32.mrf.mxu0
        %v625 = vadd.f32 0.0, %v624
        %v626 = vpop.f32.mrf.mxu0
        %627 = vmatprep.mubr.bf16.mxu0 0
        %628 = vmatmul.mubr.bf16.gmra.mxu0 %v496
        %v629 = vpop.f32.mrf.mxu0
        %v630 = vadd.f32 0.0, %v629
        %v631 = vpop.f32.mrf.mxu0
        %v632 = vpop.f32.mrf.mxu0
        %v633 = vadd.f32 0.0, %v632
        %v634 = vpop.f32.mrf.mxu0
        %635 = vmatprep.mubr.bf16.mxu0 0
        %636 = vmatmul.mubr.bf16.gmra.mxu0 %v497
        %v637 = vpop.f32.mrf.mxu0
        %v638 = vadd.f32 0.0, %v637
        %v639 = vpop.f32.mrf.mxu0
        %v640 = vpop.f32.mrf.mxu0
        %v641 = vadd.f32 0.0, %v640
        %v642 = vpop.f32.mrf.mxu0
        %643 = vmatprep.mubr.bf16.mxu0 0
        %644 = vmatmul.mubr.bf16.gmra.mxu0 %v498
        %v645 = vpop.f32.mrf.mxu0
        %v646 = vadd.f32 0.0, %v645
        %v647 = vpop.f32.mrf.mxu0
        %v648 = vpop.f32.mrf.mxu0
        %v649 = vadd.f32 0.0, %v648
        %v650 = vpop.f32.mrf.mxu0
        %651 = vdwg.mxu0
        %v652 = vld [vmem:[#allocation5] sm:$0xff]
        %v653 = vld [vmem:[#allocation5 + $0x8] sm:$0xff]
        %v654 = vadd.f32 %v590, %v652
        %v655 = vadd.f32 %v593, %v653
        %v656 = vadd.f32 %v598, %v652
        %v657 = vadd.f32 %v601, %v653
        %v658 = vadd.f32 %v606, %v652
        %v659 = vadd.f32 %v609, %v653
        %v660 = vadd.f32 %v614, %v652
        %v661 = vadd.f32 %v617, %v653
        %v662 = vadd.f32 %v622, %v652
        %v663 = vadd.f32 %v625, %v653
        %v664 = vadd.f32 %v630, %v652
        %v665 = vadd.f32 %v633, %v653
        %v666 = vadd.f32 %v638, %v652
        %v667 = vadd.f32 %v641, %v653
        %v668 = vadd.f32 %v646, %v652
        %v669 = vadd.f32 %v649, %v653
        %v670 = vmax.f32 %v654, 0.0
        %v671 = vmax.f32 %v655, 0.0
        %v672 = vmax.f32 %v656, 0.0
        %v673 = vmax.f32 %v657, 0.0
        %v674 = vmax.f32 %v658, 0.0
        %v675 = vmax.f32 %v659, 0.0
        %v676 = vmax.f32 %v660, 0.0
        %v677 = vmax.f32 %v661, 0.0
        %v678 = vmax.f32 %v662, 0.0
        %v679 = vmax.f32 %v663, 0.0
        %v680 = vmax.f32 %v664, 0.0
        %v681 = vmax.f32 %v665, 0.0
        %v682 = vmax.f32 %v666, 0.0
        %v683 = vmax.f32 %v667, 0.0
        %v684 = vmax.f32 %v668, 0.0
        %v685 = vmax.f32 %v669, 0.0
        %v686 = vmax.f32 %v670, %v671
        %v687 = vrot.slane %v686, 4
        %v688 = vmax.f32 %v686, %v687
        %v689 = vrot.slane %v688, 2
        %v690 = vmax.f32 %v688, %v689
        %v691 = vrot.slane %v690, 1
        %v692 = vmax.f32 %v690, %v691
        %v693 = vmax.f32 %v672, %v673
        %v694 = vrot.slane %v693, 4
        %v695 = vmax.f32 %v693, %v694
        %v696 = vrot.slane %v695, 2
        %v697 = vmax.f32 %v695, %v696
        %v698 = vrot.slane %v697, 1
        %v699 = vmax.f32 %v697, %v698
        %v700 = vmax.f32 %v674, %v675
        %v701 = vrot.slane %v700, 4
        %v702 = vmax.f32 %v700, %v701
        %v703 = vrot.slane %v702, 2
        %v704 = vmax.f32 %v702, %v703
        %v705 = vrot.slane %v704, 1
        %v706 = vmax.f32 %v704, %v705
        %v707 = vmax.f32 %v676, %v677
        %v708 = vrot.slane %v707, 4
        %v709 = vmax.f32 %v707, %v708
        %v710 = vrot.slane %v709, 2
        %v711 = vmax.f32 %v709, %v710
        %v712 = vrot.slane %v711, 1
        %v713 = vmax.f32 %v711, %v712
        %v714 = vmax.f32 %v678, %v679
        %v715 = vrot.slane %v714, 4
        %v716 = vmax.f32 %v714, %v715
        %v717 = vrot.slane %v716, 2
        %v718 = vmax.f32 %v716, %v717
        %v719 = vrot.slane %v718, 1
        %v720 = vmax.f32 %v718, %v719
        %v721 = vmax.f32 %v680, %v681
        %v722 = vrot.slane %v721, 4
        %v723 = vmax.f32 %v721, %v722
        %v724 = vrot.slane %v723, 2
        %v725 = vmax.f32 %v723, %v724
        %v726 = vrot.slane %v725, 1
        %v727 = vmax.f32 %v725, %v726
        %v728 = vmax.f32 %v682, %v683
        %v729 = vrot.slane %v728, 4
        %v730 = vmax.f32 %v728, %v729
        %v731 = vrot.slane %v730, 2
        %v732 = vmax.f32 %v730, %v731
        %v733 = vrot.slane %v732, 1
        %v734 = vmax.f32 %v732, %v733
        %v735 = vmax.f32 %v684, %v685
        %v736 = vrot.slane %v735, 4
        %v737 = vmax.f32 %v735, %v736
        %v738 = vrot.slane %v737, 2
        %v739 = vmax.f32 %v737, %v738
        %v740 = vrot.slane %v739, 1
        %v741 = vmax.f32 %v739, %v740
        %v742 = vpack.c.bf16 %v692, %v692
        %v743 = vpack.c.bf16 %v699, %v699
        %v744 = vpack.c.bf16 %v706, %v706
        %v745 = vpack.c.bf16 %v713, %v713
        %v746 = vpack.c.bf16 %v720, %v720
        %v747 = vpack.c.bf16 %v727, %v727
        %v748 = vpack.c.bf16 %v734, %v734
        %v749 = vpack.c.bf16 %v741, %v741
        %v750 = vld [vmem:[#allocation8] sm:$0xf]
        %v751 = vld [vmem:[#allocation8 + $0x4] sm:$0xf]
        %v752 = vld [vmem:[#allocation8 + $0x8] sm:$0xf]
        %v753 = vld [vmem:[#allocation8 + $0xc] sm:$0xf]
        %v754 = vld [vmem:[#allocation8 + $0x10] sm:$0xf]
        %v755 = vld [vmem:[#allocation8 + $0x14] sm:$0xf]
        %v756 = vld [vmem:[#allocation8 + $0x18] sm:$0xf]
        %v757 = vld [vmem:[#allocation8 + $0x1c] sm:$0xf]
        %v758 = vld [vmem:[#allocation8 + $0x20] sm:$0xf]
        %v759 = vld [vmem:[#allocation8 + $0x24] sm:$0xf]
        %v760 = vld [vmem:[#allocation8 + $0x28] sm:$0xf]
        %v761 = vld [vmem:[#allocation8 + $0x2c] sm:$0xf]
        %v762 = vld [vmem:[#allocation8 + $0x30] sm:$0xf]
        %v763 = vld [vmem:[#allocation8 + $0x34] sm:$0xf]
        %v764 = vld [vmem:[#allocation8 + $0x38] sm:$0xf]
        %v765 = vld [vmem:[#allocation8 + $0x3c] sm:$0xf]
        %v766 = vld [vmem:[%s4] sm:$0x1]
        %v768 = vlaneseq
        %v769 = vshrl.u32 %v768, 7
        %v770 = vsub.s32 0, %v769
        %v771 = vrot.slane %v766, %v770
        %v781 = vunpack.c.l.b16 %v742
        %v782 = vunpack.c.l.b16 %v743
        %v783 = vunpack.c.l.b16 %v744
        %v784 = vunpack.c.l.b16 %v745
        %v785 = vunpack.c.l.b16 %v746
        %v786 = vunpack.c.l.b16 %v747
        %v787 = vunpack.c.l.b16 %v748
        %v788 = vunpack.c.l.b16 %v749
        %vm789 = vcmask 1041409
        %v790 = vsel %vm789, %v782, %v781
        %vm791 = vcmask 1042434
        %v792 = vsel %vm791, %v783, %v790
        %vm793 = vcmask 1043459
        %v794 = vsel %vm793, %v784, %v792
        %vm795 = vcmask 1044484
        %v796 = vsel %vm795, %v785, %v794
        %vm797 = vcmask 1045509
        %v798 = vsel %vm797, %v786, %v796
        %vm799 = vcmask 1046534
        %v800 = vsel %vm799, %v787, %v798
        %vm801 = vcmask 1047559
        %v802 = vsel %vm801, %v788, %v800
        %v803 = vpack.c.b16 %v802, %v802
        %v821 = vunpack.c.l.b16 %v750
        %v822 = vunpack.c.l.b16 %v751
        %v823 = vunpack.c.l.b16 %v752
        %v824 = vunpack.c.l.b16 %v753
        %v825 = vunpack.c.l.b16 %v754
        %v826 = vunpack.c.l.b16 %v755
        %v827 = vunpack.c.l.b16 %v756
        %v828 = vunpack.c.l.b16 %v757
        %v829 = vunpack.c.l.b16 %v758
        %v830 = vunpack.c.l.b16 %v759
        %v831 = vunpack.c.l.b16 %v760
        %v832 = vunpack.c.l.b16 %v761
        %v833 = vunpack.c.l.b16 %v762
        %v834 = vunpack.c.l.b16 %v763
        %v835 = vunpack.c.l.b16 %v764
        %v836 = vunpack.c.l.b16 %v765
        %v837 = vpack.c.b16 %v822, %v821
        %v838 = vpack.c.b16 %v824, %v823
        %v839 = vpack.c.b16 %v826, %v825
        %v840 = vpack.c.b16 %v828, %v827
        %v841 = vpack.c.b16 %v830, %v829
        %v842 = vpack.c.b16 %v832, %v831
        %v843 = vpack.c.b16 %v834, %v833
        %v844 = vpack.c.b16 %v836, %v835
        %853 = vmatprep.subr.bf16.mxu0 0
        %854 = vmatpush1.bf16.msra.mxu0 %v844
        %855 = vmatprep.subr.bf16.mxu0 0
        %856 = vmatpush1.bf16.msra.mxu0 %v843
        %857 = vmatprep.subr.bf16.mxu0 0
        %858 = vmatpush1.bf16.msra.mxu0 %v842
        %859 = vmatprep.subr.bf16.mxu0 0
        %860 = vmatpush1.bf16.msra.mxu0 %v841
        %861 = vmatprep.subr.bf16.mxu0 0
        %862 = vmatpush1.bf16.msra.mxu0 %v840
        %863 = vmatprep.subr.bf16.mxu0 0
        %864 = vmatpush1.bf16.msra.mxu0 %v839
        %865 = vmatprep.subr.bf16.mxu0 0
        %866 = vmatpush1.bf16.msra.mxu0 %v838
        %867 = vmatprep.subr.bf16.mxu0 0
        %868 = vmatpush1.bf16.msra.mxu0 %v837
        %869 = vmatprep.subr.bf16.mxu0 0
        %870 = vmatpush2.bf16.msra.mxu0 0
        %871 = vmatprep.subr.bf16.mxu0 0
        %872 = vmatpush2.bf16.msra.mxu0 0
        %873 = vmatprep.subr.bf16.mxu0 0
        %874 = vmatpush2.bf16.msra.mxu0 0
        %875 = vmatprep.subr.bf16.mxu0 0
        %876 = vmatpush2.bf16.msra.mxu0 0
        %877 = vmatprep.subr.bf16.mxu0 0
        %878 = vmatpush2.bf16.msra.mxu0 0
        %879 = vmatprep.subr.bf16.mxu0 0
        %880 = vmatpush2.bf16.msra.mxu0 0
        %881 = vmatprep.subr.bf16.mxu0 0
        %882 = vmatpush2.bf16.msra.mxu0 0
        %883 = vmatprep.subr.bf16.mxu0 0
        %884 = vmatpush2.bf16.msra.mxu0 0
        %885 = vmatprep.mubr.bf16.mxu0 0
        %886 = vmatmul.mubr.bf16.gmra.mxu0 %v803
        %v887 = vpop.f32.mrf.mxu0
        %v888 = vadd.f32 %v771, %v887
        %v889 = vpop.f32.mrf.mxu0
        %v890 = vpop.f32.mrf.mxu0
        %v891 = vpop.f32.mrf.mxu0
        %892 = vdwg.mxu0
        %v893 = vxor.u32 %v888, 2147483648
        %v894 = vmul.f32 %v893, 1.442695
        %v895 = vpow.pop %v894
        %v896 = vadd.f32 %v895, 1.0
        %v897 = vrcp.pop %v896
        %v898 = vmul.f32 1.0, %v897
        %v899 = vmax.f32 %v888, 0.0
        %v900 = vmul.f32 %v898, %v899
        %v901 = vsub.f32 1.0, %v898
        %v910 = vsel %vm789, %v699, %v692
        %v911 = vsel %vm791, %v706, %v910
        %v912 = vsel %vm793, %v713, %v911
        %v913 = vsel %vm795, %v720, %v912
        %v914 = vsel %vm797, %v727, %v913
        %v915 = vsel %vm799, %v734, %v914
        %v916 = vsel %vm801, %v741, %v915
        %v918 = vmul.f32 %v901, %v916
        %v919 = vadd.f32 %v900, %v918
        %v920 = vpack.c.bf16 %v919, %v919
        %v921 = vld [vmem:[#allocation10] sm:$0xf]
        %v922 = vld [vmem:[#allocation10 + $0x4] sm:$0xf]
        %v923 = vld [vmem:[#allocation10 + $0x8] sm:$0xf]
        %v924 = vld [vmem:[#allocation10 + $0xc] sm:$0xf]
        %v925 = vld [vmem:[#allocation10 + $0x10] sm:$0xf]
        %v926 = vld [vmem:[#allocation10 + $0x14] sm:$0xf]
        %v927 = vld [vmem:[#allocation10 + $0x18] sm:$0xf]
        %v928 = vld [vmem:[#allocation10 + $0x1c] sm:$0xf]
        %v929 = vld [vmem:[#allocation10 + $0x20] sm:$0xf]
        %v930 = vld [vmem:[#allocation10 + $0x24] sm:$0xf]
        %v931 = vld [vmem:[#allocation10 + $0x28] sm:$0xf]
        %v932 = vld [vmem:[#allocation10 + $0x2c] sm:$0xf]
        %v933 = vld [vmem:[#allocation10 + $0x30] sm:$0xf]
        %v934 = vld [vmem:[#allocation10 + $0x34] sm:$0xf]
        %v935 = vld [vmem:[#allocation10 + $0x38] sm:$0xf]
        %v936 = vld [vmem:[#allocation10 + $0x3c] sm:$0xf]
        %v937 = vld [vmem:[%s6] sm:$0x1]
        %v939 = vlaneseq
        %v940 = vshrl.u32 %v939, 7
        %v941 = vsub.s32 0, %v940
        %v942 = vrot.slane %v937, %v941
        %v960 = vunpack.c.l.b16 %v921
        %v961 = vunpack.c.l.b16 %v922
        %v962 = vunpack.c.l.b16 %v923
        %v963 = vunpack.c.l.b16 %v924
        %v964 = vunpack.c.l.b16 %v925
        %v965 = vunpack.c.l.b16 %v926
        %v966 = vunpack.c.l.b16 %v927
        %v967 = vunpack.c.l.b16 %v928
        %v968 = vunpack.c.l.b16 %v929
        %v969 = vunpack.c.l.b16 %v930
        %v970 = vunpack.c.l.b16 %v931
        %v971 = vunpack.c.l.b16 %v932
        %v972 = vunpack.c.l.b16 %v933
        %v973 = vunpack.c.l.b16 %v934
        %v974 = vunpack.c.l.b16 %v935
        %v975 = vunpack.c.l.b16 %v936
        %v976 = vpack.c.b16 %v961, %v960
        %v977 = vpack.c.b16 %v963, %v962
        %v978 = vpack.c.b16 %v965, %v964
        %v979 = vpack.c.b16 %v967, %v966
        %v980 = vpack.c.b16 %v969, %v968
        %v981 = vpack.c.b16 %v971, %v970
        %v982 = vpack.c.b16 %v973, %v972
        %v983 = vpack.c.b16 %v975, %v974
        %992 = vmatprep.subr.bf16.mxu0 0
        %993 = vmatpush1.bf16.msra.mxu0 %v983
        %994 = vmatprep.subr.bf16.mxu0 0
        %995 = vmatpush1.bf16.msra.mxu0 %v982
        %996 = vmatprep.subr.bf16.mxu0 0
        %997 = vmatpush1.bf16.msra.mxu0 %v981
        %998 = vmatprep.subr.bf16.mxu0 0
        %999 = vmatpush1.bf16.msra.mxu0 %v980
        %1000 = vmatprep.subr.bf16.mxu0 0
        %1001 = vmatpush1.bf16.msra.mxu0 %v979
        %1002 = vmatprep.subr.bf16.mxu0 0
        %1003 = vmatpush1.bf16.msra.mxu0 %v978
        %1004 = vmatprep.subr.bf16.mxu0 0
        %1005 = vmatpush1.bf16.msra.mxu0 %v977
        %1006 = vmatprep.subr.bf16.mxu0 0
        %1007 = vmatpush1.bf16.msra.mxu0 %v976
        %1008 = vmatprep.subr.bf16.mxu0 0
        %1009 = vmatpush2.bf16.msra.mxu0 0
        %1010 = vmatprep.subr.bf16.mxu0 0
        %1011 = vmatpush2.bf16.msra.mxu0 0
        %1012 = vmatprep.subr.bf16.mxu0 0
        %1013 = vmatpush2.bf16.msra.mxu0 0
        %1014 = vmatprep.subr.bf16.mxu0 0
        %1015 = vmatpush2.bf16.msra.mxu0 0
        %1016 = vmatprep.subr.bf16.mxu0 0
        %1017 = vmatpush2.bf16.msra.mxu0 0
        %1018 = vmatprep.subr.bf16.mxu0 0
        %1019 = vmatpush2.bf16.msra.mxu0 0
        %1020 = vmatprep.subr.bf16.mxu0 0
        %1021 = vmatpush2.bf16.msra.mxu0 0
        %1022 = vmatprep.subr.bf16.mxu0 0
        %1023 = vmatpush2.bf16.msra.mxu0 0
        %1024 = vmatprep.mubr.bf16.mxu0 0
        %1025 = vmatmul.mubr.bf16.gmra.mxu0 %v920
        %v1026 = vpop.f32.mrf.mxu0
        %v1027 = vadd.f32 %v942, %v1026
        %v1028 = vpop.f32.mrf.mxu0
        %v1029 = vpop.f32.mrf.mxu0
        %v1030 = vpop.f32.mrf.mxu0
        %1031 = vdwg.mxu0
        %v1032 = vpack.c.bf16 %v1027, %v1027
        %v1033 = vld [vmem:[#allocation11] sm:$0xf]
        %v1034 = vld [vmem:[#allocation11 + $0x4] sm:$0xf]
        %v1035 = vld [vmem:[#allocation11 + $0x8] sm:$0xf]
        %v1036 = vld [vmem:[#allocation11 + $0xc] sm:$0xf]
        %v1037 = vld [vmem:[#allocation11 + $0x10] sm:$0xf]
        %v1038 = vld [vmem:[#allocation11 + $0x14] sm:$0xf]
        %v1039 = vld [vmem:[#allocation11 + $0x18] sm:$0xf]
        %v1040 = vld [vmem:[#allocation11 + $0x1c] sm:$0xf]
        %v1041 = vld [vmem:[#allocation11 + $0x20] sm:$0xf]
        %v1042 = vld [vmem:[#allocation11 + $0x24] sm:$0xf]
        %v1043 = vld [vmem:[#allocation11 + $0x28] sm:$0xf]
        %v1044 = vld [vmem:[#allocation11 + $0x2c] sm:$0xf]
        %v1045 = vld [vmem:[#allocation11 + $0x30] sm:$0xf]
        %v1046 = vld [vmem:[#allocation11 + $0x34] sm:$0xf]
        %v1047 = vld [vmem:[#allocation11 + $0x38] sm:$0xf]
        %v1048 = vld [vmem:[#allocation11 + $0x3c] sm:$0xf]
        %v1049 = vld [vmem:[%s8] sm:$0x1]
        %v1051 = vlaneseq
        %v1052 = vshrl.u32 %v1051, 7
        %v1053 = vsub.s32 0, %v1052
        %v1054 = vrot.slane %v1049, %v1053
        %v1072 = vunpack.c.l.b16 %v1033
        %v1073 = vunpack.c.l.b16 %v1034
        %v1074 = vunpack.c.l.b16 %v1035
        %v1075 = vunpack.c.l.b16 %v1036
        %v1076 = vunpack.c.l.b16 %v1037
        %v1077 = vunpack.c.l.b16 %v1038
        %v1078 = vunpack.c.l.b16 %v1039
        %v1079 = vunpack.c.l.b16 %v1040
        %v1080 = vunpack.c.l.b16 %v1041
        %v1081 = vunpack.c.l.b16 %v1042
        %v1082 = vunpack.c.l.b16 %v1043
        %v1083 = vunpack.c.l.b16 %v1044
        %v1084 = vunpack.c.l.b16 %v1045
        %v1085 = vunpack.c.l.b16 %v1046
        %v1086 = vunpack.c.l.b16 %v1047
        %v1087 = vunpack.c.l.b16 %v1048
        %v1088 = vpack.c.b16 %v1073, %v1072
        %v1089 = vpack.c.b16 %v1075, %v1074
        %v1090 = vpack.c.b16 %v1077, %v1076
        %v1091 = vpack.c.b16 %v1079, %v1078
        %v1092 = vpack.c.b16 %v1081, %v1080
        %v1093 = vpack.c.b16 %v1083, %v1082
        %v1094 = vpack.c.b16 %v1085, %v1084
        %v1095 = vpack.c.b16 %v1087, %v1086
        %1104 = vmatprep.subr.bf16.mxu0 0
        %1105 = vmatpush1.bf16.msra.mxu0 %v1095
        %1106 = vmatprep.subr.bf16.mxu0 0
        %1107 = vmatpush1.bf16.msra.mxu0 %v1094
        %1108 = vmatprep.subr.bf16.mxu0 0
        %1109 = vmatpush1.bf16.msra.mxu0 %v1093
        %1110 = vmatprep.subr.bf16.mxu0 0
        %1111 = vmatpush1.bf16.msra.mxu0 %v1092
        %1112 = vmatprep.subr.bf16.mxu0 0
        %1113 = vmatpush1.bf16.msra.mxu0 %v1091
        %1114 = vmatprep.subr.bf16.mxu0 0
        %1115 = vmatpush1.bf16.msra.mxu0 %v1090
        %1116 = vmatprep.subr.bf16.mxu0 0
        %1117 = vmatpush1.bf16.msra.mxu0 %v1089
        %1118 = vmatprep.subr.bf16.mxu0 0
        %1119 = vmatpush1.bf16.msra.mxu0 %v1088
        %1120 = vmatprep.subr.bf16.mxu0 0
        %1121 = vmatpush2.bf16.msra.mxu0 0
        %1122 = vmatprep.subr.bf16.mxu0 0
        %1123 = vmatpush2.bf16.msra.mxu0 0
        %1124 = vmatprep.subr.bf16.mxu0 0
        %1125 = vmatpush2.bf16.msra.mxu0 0
        %1126 = vmatprep.subr.bf16.mxu0 0
        %1127 = vmatpush2.bf16.msra.mxu0 0
        %1128 = vmatprep.subr.bf16.mxu0 0
        %1129 = vmatpush2.bf16.msra.mxu0 0
        %1130 = vmatprep.subr.bf16.mxu0 0
        %1131 = vmatpush2.bf16.msra.mxu0 0
        %1132 = vmatprep.subr.bf16.mxu0 0
        %1133 = vmatpush2.bf16.msra.mxu0 0
        %1134 = vmatprep.subr.bf16.mxu0 0
        %1135 = vmatpush2.bf16.msra.mxu0 0
        %1136 = vmatprep.mubr.bf16.mxu0 0
        %1137 = vmatmul.mubr.bf16.gmra.mxu0 %v1032
        %v1138 = vpop.f32.mrf.mxu0
        %v1139 = vadd.f32 %v1054, %v1138
        %v1140 = vpop.f32.mrf.mxu0
        %v1141 = vpop.f32.mrf.mxu0
        %v1142 = vpop.f32.mrf.mxu0
        %1143 = vdwg.mxu0
        %1144 = vst [vmem:[%s424] sm:$0xff] %v1139
        %s1145 = sand.u32 %s231, 1
        %s1146 = scalar_lea.sflag [#allocation4], %s1145
        %s1147 = sand.u32 %s231, 1
        %s1148 = smul.addr %s1147, 8
        %s1149 = scalar_lea.vmem [#allocation13], %s1148
        // Predicated region
        $region81: #{tpu_custom_call.1} parent=55 // pred_check
          %p1150 = pneg %p241
        $region82: #{tpu_custom_call.1} parent=55 // pred_check_branch
          %1152 = sbr.rel (%p1150) target = $region84
        $region83: #{tpu_custom_call.1} parent=55 // pred_region
          %s1154 = ssub.s32 128, 128
          %1155 = vsyncadd %s1146, %s1154
          %s1156 = smul.addr %s29, 128
          %s1157 = scalar_lea.hbm %s9, %s1156
          %s1159 = sshll.u32 %s1149, 4
          %s1160 = int_to_ptr.vmem [resolvable:$true] %s1159
          %1162 = dma.vmem_to_hbm [thread:$0]  %s1160, 128, %s1157, %s1146
        $region84: #{tpu_custom_call.1} parent=55 // pred_fallthru
          _
      $region56: #{tpu_custom_call.1} parent=5 // pred_fallthru
        _
      %p1163 = scmp.le.s32.totalorder 2, %s24
      // Predicated region
      $region85: #{tpu_custom_call.1} parent=5 // pred_check
        %p1164 = pneg %p1163
      $region86: #{tpu_custom_call.1} parent=5 // pred_check_branch
        %1166 = sbr.rel (%p1164) target = $region88
      $region87: #{tpu_custom_call.1} parent=5 // pred_region
        %s1167 = ssub.s32 %s24, 2
        // Predicated region
        $region89: #{tpu_custom_call.1} parent=87 // pred_check
          %p1168 = pneg %p247
        $region90: #{tpu_custom_call.1} parent=87 // pred_check_branch
          %1170 = sbr.rel (%p1168) target = $region92
        $region91: #{tpu_custom_call.1} parent=87 // pred_region
          %s1171 = sand.u32 %s232, 1
          %s1172 = scalar_lea.sflag [#allocation4], %s1171
          %s1173 = sand.u32 %s232, 1
          %s1174 = smul.addr %s1173, 8
          %s1175 = scalar_lea.vmem [#allocation13], %s1174
          %1176 = dma.done %s1172, 128
        $region92: #{tpu_custom_call.1} parent=87 // pred_fallthru
          _
      $region88: #{tpu_custom_call.1} parent=5 // pred_fallthru
        _
    $region6: #{tpu_custom_call.1} parent=1 // loop_footer
      %s28 = sadd.s32 1, %s24
    $region7: #{tpu_custom_call.1} parent=1 // loop_footer_branch
      %23 = sbr.rel target = $region3
    $region8: #{tpu_custom_call.1} parent=1 // loop_exit
      _
    %1177 = vsyncpa [#allocation3], 1
    %s1178 = scalar_lea.sflag [#allocation3], 1
    %1179 = vsyncpa %s1178, 1
    %1180 = vsyncpa [#allocation6], 1
    %1181 = vsyncpa [#allocation9], 1
    %1182 = vsyncpa [#allocation12], 1
    %1183 = vsyncpa [#allocation4], 1
    %s1184 = scalar_lea.sflag [#allocation4], 1
    %1185 = vsyncpa %s1184, 1

</llo_original>
